<compile_context>
chip_gen: v7x
topology: tpu7x:2x2x1
jax: 0.10.0
libtpu: 0.0.40
codegen_flags: <defaults>
</compile_context>

<pallas_src>
import jax
import jax.numpy as jnp
from jax.experimental import pallas as pl
from jax.experimental.pallas import tpu as pltpu


# ----------------------------------------------------------------------------
# Kernels
# ----------------------------------------------------------------------------
def _bn_kernel_row_params(ss_ref, x_ref, o_ref):
    """Layout A: params (block_rows, 2) f32 [col 0 = scale, col 1 = shift]."""
    x = x_ref[...].astype(jnp.float32)
    ss = ss_ref[...]
    scale = ss[:, 0:1]                     # (block_rows, 1), lane-broadcast
    shift = ss[:, 1:2]
    o_ref[...] = (x * scale + shift).astype(o_ref.dtype)


def _bn_kernel_lane_params(ss_ref, x_ref, o_ref):
    """Layout B: params (2, block_lanes) f32 [row 0 = scale, row 1 = shift]."""
    x = x_ref[...].astype(jnp.float32)
    ss = ss_ref[...]
    scale = ss[0:1, :]                     # (1, block_lanes), sublane-broadcast
    shift = ss[1:2, :]
    o_ref[...] = (x * scale + shift).astype(o_ref.dtype)


# ----------------------------------------------------------------------------
# Block / VMEM sizing helpers
# ----------------------------------------------------------------------------
def _round_up(x, m):
    return ((x + m - 1) // m) * m


def _chip_config():
    """(block target bytes, tensorcores per chip) from the local device kind."""
    kind = ""
    try:
        kind = jax.devices()[0].device_kind.lower()
    except Exception:
        pass
    if "v5" in kind:
        return 3 << 20, 1          # v5e: 16 MiB default scoped VMEM -> smaller blocks
    if "v7" in kind:
        return 6 << 20, 2          # v7x: 3.2 TB/s HBM, 2 TCs -> bigger blocks, >=2 grid blocks
    return 4 << 20, 1              # v6e default


def _pick_block(rows, lanes, itemsize, sublane, target_bytes,
                min_grid_blocks=1, max_block_rows=2048):
    """Pick (block_rows, block_lanes).

    Each dim is a multiple of the native tile (sublane / 128) or the full
    extent.  Sizing uses sublane/lane-padded shapes so tiny-row layouts
    (e.g. (N, C*H*W) with N=2) do not blow the VMEM budget.
    """
    # 1) Lanes: prefer full extent (one contiguous DMA slab per row) if one
    #    sublane-group of rows at that width fits the target.
    lane_cap = max(128, ((target_bytes // (sublane * itemsize)) // 128) * 128)
    block_lanes = lanes if lanes <= lane_cap else lane_cap

    # 2) Rows: as many as fit the target at the padded lane width.
    padded_lanes = _round_up(block_lanes, 128)
    row_cap = max(1, target_bytes // (padded_lanes * itemsize))
    if _round_up(rows, sublane) <= row_cap:
        block_rows = rows                                   # full extent
    else:
        block_rows = max(sublane, (row_cap // sublane) * sublane)
    # Cap rows so the 128-lane-padded per-row params stay <= ~1 MiB/buffer.
    if block_rows > max_block_rows:
        block_rows = max_block_rows                         # multiple of 8/16/32

    # 3) v7x: ensure enough blocks to feed both TensorCores.
    for _ in range(8):
        nblk = ((rows + block_rows - 1) // block_rows) * \
               ((lanes + block_lanes - 1) // block_lanes)
        if nblk >= min_grid_blocks:
            break
        if block_rows >= 2 * sublane:
            block_rows = _round_up((block_rows + 1) // 2, sublane)
        elif block_lanes >= 2 * 128:
            block_lanes = _round_up((block_lanes + 1) // 2, 128)
        else:
            break
    return block_rows, block_lanes


def _vmem_bytes_needed(block_rows, block_lanes, itemsize, sublane, params_layout):
    """Double-buffered VMEM footprint, including (8,128) tile padding."""
    pr = _round_up(max(block_rows, 1), sublane)
    pln = _round_up(block_lanes, 128)
    xio = 2 * 2 * pr * pln * itemsize                       # x + out, 2 buffers each
    if params_layout == "rows":                             # (block_rows, 2) f32 -> pads to 128 lanes
        pp = 2 * _round_up(max(block_rows, 1), 8) * 128 * 4
    else:                                                   # (2, block_lanes) f32 -> pads to 8 sublanes
        pp = 2 * 8 * pln * 4
    return xio + pp


# ----------------------------------------------------------------------------
# Public entry point
# ----------------------------------------------------------------------------
def frozen_batch_norm_2d(x, weight, bias, running_mean, running_var,
                         eps=1e-5, alias_input=False):
    """Matches FrozenBatchNorm2d.forward: x * (w * rsqrt(rv + eps)) + (b - rm * scale)."""
    N, C, H, W = x.shape
    itemsize = jnp.dtype(x.dtype).itemsize
    sublane = max(8, 32 // itemsize)        # 8 f32 / 16 bf16 / 32 int8

    # Parameter folding (identical math to the module), kept in f32.
    scale = weight.astype(jnp.float32) * jax.lax.rsqrt(
        running_var.astype(jnp.float32) + jnp.float32(eps))
    shift = bias.astype(jnp.float32) - running_mean.astype(jnp.float32) * scale

    hw = H * W
    target_bytes, num_tc = _chip_config()
    min_blocks = 2 * num_tc if num_tc > 1 else 1

    if hw % 128 == 0:
        # Layout A: (N*C, H*W), per-row params packed as (rows, 2).
        rows, lanes = N * C, hw
        x2 = x.reshape(rows, lanes)
        params = jnp.stack(
            [jnp.broadcast_to(scale[None, :], (N, C)).reshape(rows),
             jnp.broadcast_to(shift[None, :], (N, C)).reshape(rows)],
            axis=1)                                          # (rows, 2) f32
        kernel = _bn_kernel_row_params
        params_layout = "rows"
        block_rows, block_lanes = _pick_block(
            rows, lanes, itemsize, sublane, target_bytes, min_blocks, 2048)
        param_spec = pl.BlockSpec((block_rows, 2), lambda i, j: (i, 0))
    else:
        # Layout B: (N, C*H*W), per-lane params packed as (2, lanes).
        rows, lanes = N, C * hw
        x2 = x.reshape(rows, lanes)
        params = jnp.stack(
            [jnp.repeat(scale, hw), jnp.repeat(shift, hw)], axis=0)  # (2, lanes) f32
        kernel = _bn_kernel_lane_params
        params_layout = "lanes"
        block_rows, block_lanes = _pick_block(
            rows, lanes, itemsize, sublane, target_bytes, min_blocks)
        param_spec = pl.BlockSpec((2, block_lanes), lambda i, j: (0, j))

    grid = (pl.cdiv(rows, block_rows), pl.cdiv(lanes, block_lanes))

    needed = _vmem_bytes_needed(block_rows, block_lanes, itemsize, sublane,
                                params_layout)
    vmem_limit = int(min(max(needed + (8 << 20), 32 << 20), 48 << 20))

    cost = pl.CostEstimate(
        flops=2 * rows * lanes,
        bytes_accessed=2 * rows * lanes * itemsize + int(params.size) * 4,
        transcendentals=0)

    out2 = pl.pallas_call(
        kernel,
        out_shape=jax.ShapeDtypeStruct((rows, lanes), x.dtype),
        grid_spec=pltpu.PrefetchScalarGridSpec(
            num_scalar_prefetch=0,
            grid=grid,
            in_specs=[
                param_spec,   # constant along the inner lane axis for layout A
                pl.BlockSpec((block_rows, block_lanes), lambda i, j: (i, j)),
            ],
            out_specs=pl.BlockSpec((block_rows, block_lanes),
                                   lambda i, j: (i, j)),
        ),
        compiler_params=pltpu.CompilerParams(
            dimension_semantics=("parallel", "parallel"),
            vmem_limit_bytes=vmem_limit),
        cost_estimate=cost,
        # Only beneficial when the caller donates x at a jit boundary;
        # otherwise XLA inserts a defensive copy, so keep it opt-in.
        input_output_aliases=({1: 0} if alias_input else {}),
    )(params, x2)

    return out2.reshape(N, C, H, W)


def frozen_batch_norm_2d_ref(x, weight, bias, running_mean, running_var, eps=1e-5):
    w = weight.reshape(1, -1, 1, 1).astype(jnp.float32)
    b = bias.reshape(1, -1, 1, 1).astype(jnp.float32)
    rv = running_var.reshape(1, -1, 1, 1).astype(jnp.float32)
    rm = running_mean.reshape(1, -1, 1, 1).astype(jnp.float32)
    scale = w * jax.lax.rsqrt(rv + eps)
    out = x.astype(jnp.float32) * scale + (b - rm * scale)
    return out.astype(x.dtype)


if __name__ == "__main__":
    key = jax.random.PRNGKey(0)
    kx, kw, kb, km, kv, kx2 = jax.random.split(key, 6)

    # Frozen buffers (shapes per __init__: all of size n=C).
    N, C, H, W = 2, 4, 16, 16
    weight = 1.0 + 0.1 * jax.random.normal(kw, (C,), dtype=jnp.float32)
    bias = 0.1 * jax.random.normal(kb, (C,), dtype=jnp.float32)
    running_mean = 0.1 * jax.random.normal(km, (C,), dtype=jnp.float32)
    running_var = jnp.abs(jax.random.normal(kv, (C,), dtype=jnp.float32)) + 0.5

    # Case 1: H*W multiple of 128 -> lane-dense (N*C, H*W) layout, f32.
    x = jax.random.normal(kx, (N, C, H, W), dtype=jnp.float32)
    out = jax.block_until_ready(
        frozen_batch_norm_2d(x, weight, bias, running_mean, running_var))
    ref = frozen_batch_norm_2d_ref(x, weight, bias, running_mean, running_var)
    assert out.shape == (N, C, H, W) and out.dtype == x.dtype
    assert jnp.allclose(out, ref, atol=1e-5, rtol=1e-5)

    # Case 1b: bf16 activations (exercises 16-row sublane rounding + cast).
    x_bf16 = x.astype(jnp.bfloat16)
    out_bf16 = jax.block_until_ready(
        frozen_batch_norm_2d(x_bf16, weight, bias, running_mean, running_var))
    ref_bf16 = frozen_batch_norm_2d_ref(x_bf16, weight, bias, running_mean,
                                        running_var)
    assert out_bf16.dtype == jnp.bfloat16
    assert jnp.allclose(out_bf16.astype(jnp.float32),
                        ref_bf16.astype(jnp.float32), atol=5e-2, rtol=5e-2)

    # Case 2: 7x7 feature map (H*W = 49, not a multiple of 128) ->
    #         (N, C*H*W) layout with per-lane scale/shift.
    N2, C2, H2, W2 = 2, 4, 7, 7
    x_small = jax.random.normal(kx2, (N2, C2, H2, W2), dtype=jnp.float32)
    out_small = jax.block_until_ready(
        frozen_batch_norm_2d(x_small, weight, bias, running_mean, running_var))
    ref_small = frozen_batch_norm_2d_ref(x_small, weight, bias, running_mean,
                                         running_var)
    assert out_small.shape == (N2, C2, H2, W2) and out_small.dtype == x_small.dtype
    assert jnp.allclose(out_small, ref_small, atol=1e-5, rtol=1e-5)

    print("KERNEL_OK")
</pallas_src>

<mosaic_0001>
module attributes {stable_mosaic.version = 11 : i64} {
  func.func @_bn_kernel_row_params(%arg0: i32, %arg1: i32, %arg2: memref<8x2xf32, #tpu.memory_space<vmem>>, %arg3: memref<8x256xf32, #tpu.memory_space<vmem>>, %arg4: memref<8x256xf32, #tpu.memory_space<vmem>>) attributes {dimension_semantics = [#tpu.dimension_semantics<parallel>, #tpu.dimension_semantics<parallel>], iteration_bounds = array<i64: 1, 1>, scalar_prefetch = 0 : i64, scratch_operands = 0 : i64, tpu.core_type = #tpu.core_type<tc>, window_params = [{transform_indices = @transform_0, window_bounds = array<i64: 8, 2>}, {transform_indices = @transform_1, window_bounds = array<i64: 8, 256>}, {transform_indices = @transform_2, window_bounds = array<i64: 8, 256>}]} {
    %c0 = arith.constant 0 : index
    %c0_0 = arith.constant 0 : index
    %0 = vector.load %arg3[%c0, %c0_0] : memref<8x256xf32, #tpu.memory_space<vmem>>, vector<8x256xf32>
    %c0_1 = arith.constant 0 : index
    %c0_2 = arith.constant 0 : index
    %1 = vector.load %arg2[%c0_1, %c0_2] : memref<8x2xf32, #tpu.memory_space<vmem>>, vector<8x2xf32>
    %2 = vector.extract_strided_slice %1 {offsets = [0, 0], sizes = [8, 1], strides = [1, 1]} : vector<8x2xf32> to vector<8x1xf32>
    %3 = vector.extract_strided_slice %1 {offsets = [0, 1], sizes = [8, 1], strides = [1, 1]} : vector<8x2xf32> to vector<8x1xf32>
    %4 = vector.broadcast %2 : vector<8x1xf32> to vector<8x256xf32>
    %5 = arith.mulf %0, %4 : vector<8x256xf32>
    %6 = vector.broadcast %3 : vector<8x1xf32> to vector<8x256xf32>
    %7 = arith.addf %5, %6 : vector<8x256xf32>
    %c0_3 = arith.constant 0 : index
    %c0_4 = arith.constant 0 : index
    %8 = vector.load %arg4[%c0_3, %c0_4] : memref<8x256xf32, #tpu.memory_space<vmem>>, vector<8x256xf32>
    tpu.vector_store %arg4[%c0_3, %c0_4], %7 {strides = array<i32>} : memref<8x256xf32, #tpu.memory_space<vmem>>, vector<8x256xf32>,
    return
  }
  func.func @transform_0(%arg0: i32, %arg1: i32) -> (i32, i32) {
    %c0_i32 = arith.constant 0 : i32
    %c0_i32_0 = arith.constant 0 : i32
    return %arg0, %c0_i32 : i32, i32
  }
  func.func @transform_1(%arg0: i32, %arg1: i32) -> (i32, i32) {
    %c0_i32 = arith.constant 0 : i32
    return %arg0, %arg1 : i32, i32
  }
  func.func @transform_2(%arg0: i32, %arg1: i32) -> (i32, i32) {
    %c0_i32 = arith.constant 0 : i32
    return %arg0, %arg1 : i32, i32
  }
}

</mosaic_0001>

<llo_original>
// kernel: tpu_custom_call.1
$region0: #{tpu_custom_call.1}
  #allocation0 [shape = 'u32[]', space=smem, size = 0x4, offset = 0x4, fixed_abs, tag = 'smem constant byte address 0x4 - core index']
  #allocation1 [shape = 'u32[144,128]{1,0:T(1,128)}', space=vmem, size = 0x12000, scoped, tag = 'internal scratch']
  %s0 = inlined_call_operand.vmem [shape: f32[8,2], index: 0, kind: input, shape index: {}]
  %s1 = inlined_call_operand.hbm [shape: f32[8,256], index: 1, kind: input, shape index: {}]
  %s2 = inlined_call_operand.hbm [shape: f32[8,256], index: 2, kind: output, shape index: {}]
  %s3 = sld [smem:[#allocation0]]
  $region22: #{tpu_custom_call.1} parent=0
    _
  %s5 = ssub.s32 1, %s3
  %s6 = scalar_select 0, %s5, %s3
  $region1: #{tpu_custom_call.1} parent=0
    #allocation2 [shape = 'u8[8192]{0}', space=vmem, size = 0x2000, scoped, tag = 'input window, operand 1, single buffered']
    #allocation3 [shape = 's32[1]{0}', space=sflag, size = 0x4, scoped, tag = 'scoped memory for tpu_custom_call.1']
    #allocation4 [shape = 's32[1]{0}', space=sflag, size = 0x4, scoped, tag = 'scoped memory for tpu_custom_call.1']
    #allocation5 [shape = 'u8[8192]{0}', space=vmem, size = 0x2000, scoped, tag = 'output window, operand 0, single buffered']
    %7 = vsyncpa [#allocation3], 0
    %8 = vsyncpa [#allocation4], 0
    // Predicated region
    $region2: #{tpu_custom_call.1} parent=1 // pred_check
      _
    $region3: #{tpu_custom_call.1} parent=1 // pred_check_branch
      %10 = sbr.rel (0) target = $region5
    $region4: #{tpu_custom_call.1} parent=1 // pred_region
      _
    $region5: #{tpu_custom_call.1} parent=1 // pred_fallthru
      _
    // Predicated region
    $region6: #{tpu_custom_call.1} parent=1 // pred_check
      _
    $region7: #{tpu_custom_call.1} parent=1 // pred_check_branch
      %12 = sbr.rel (0) target = $region9
    $region8: #{tpu_custom_call.1} parent=1 // pred_region
      %s14 = ssub.s32 256, 256
      %15 = vsyncadd [#allocation3], %s14
      %s17 = sshll.u32 [#allocation2], 4
      %s18 = int_to_ptr.vmem [resolvable:$true] %s17
      %20 = dma.hbm_to_vmem [thread:$0]  %s1, 256, %s18, [#allocation3]
    $region9: #{tpu_custom_call.1} parent=1 // pred_fallthru
      _
    // Predicated region
    $region10: #{tpu_custom_call.1} parent=1 // pred_check
      _
    $region11: #{tpu_custom_call.1} parent=1 // pred_check_branch
      %22 = sbr.rel (0) target = $region13
    $region12: #{tpu_custom_call.1} parent=1 // pred_region
      %23 = dma.done [#allocation3], 256
    $region13: #{tpu_custom_call.1} parent=1 // pred_fallthru
      _
    %v24 = vld [vmem:[#allocation2] sm:$0xff]
    %v25 = vld [vmem:[#allocation2 + $0x8] sm:$0xff]
    %v26 = vld [vmem:[%s0] sm:$0xff]
    %28 = vset.pattern.permute.xlu0 0
    %29 = vperm.xlu0 %28, %v26
    %v30 = vpop.permute.xlu0 %29
    %v32 = vmul.f32 %v24, %v30
    %v33 = vmul.f32 %v25, %v30
    %34 = vset.pattern.permute.xlu0 1
    %35 = vperm.xlu0 %34, %v26
    %v36 = vpop.permute.xlu0 %35
    %v38 = vadd.f32 %v32, %v36
    %v39 = vadd.f32 %v33, %v36
    %40 = vst [vmem:[#allocation5] sm:$0xff] %v38
    %41 = vst [vmem:[#allocation5 + $0x8] sm:$0xff] %v39
    // Predicated region
    $region14: #{tpu_custom_call.1} parent=1 // pred_check
      _
    $region15: #{tpu_custom_call.1} parent=1 // pred_check_branch
      %43 = sbr.rel (0) target = $region17
    $region16: #{tpu_custom_call.1} parent=1 // pred_region
      %s45 = ssub.s32 256, 256
      %46 = vsyncadd [#allocation4], %s45
      %s48 = sshll.u32 [#allocation5], 4
      %s49 = int_to_ptr.vmem [resolvable:$true] %s48
      %51 = dma.vmem_to_hbm [thread:$0]  %s49, 256, %s2, [#allocation4]
    $region17: #{tpu_custom_call.1} parent=1 // pred_fallthru
      _
    // Predicated region
    $region18: #{tpu_custom_call.1} parent=1 // pred_check
      _
    $region19: #{tpu_custom_call.1} parent=1 // pred_check_branch
      %53 = sbr.rel (0) target = $region21
    $region20: #{tpu_custom_call.1} parent=1 // pred_region
      %54 = dma.done [#allocation4], 256
    $region21: #{tpu_custom_call.1} parent=1 // pred_fallthru
      _
    %55 = vsyncpa [#allocation3], 1
    %56 = vsyncpa [#allocation4], 1

</llo_original>
